<compile_context>
chip_gen: v6e
topology: v6e:2x2x1
jax: 0.10.0
libtpu: 0.0.40
codegen_flags: <defaults>
</compile_context>

<pallas_src>
import functools
from dataclasses import dataclass

import numpy as np
import jax
import jax.numpy as jnp
from jax.experimental import pallas as pl
from jax.experimental.pallas import tpu as pltpu


# ----------------------------- global knobs ---------------------------------

TM, TN, TK = 256, 512, 512          # linear-kernel tile caps
ATTN_TQ, ATTN_TK = 256, 128         # flash-attention tile caps
# Scoped VMEM budget: safe on v7x (64 MiB physical) as well as v5e/v6e (128 MiB).
# TODO(synk): raise to ~96 MiB and use pl.Buffered(3) on the logits weight on v6e.
VMEM_LIMIT_BYTES = 48 * 1024 * 1024
# MXU operand dtype: bf16 operands, f32 accumulation.
MXU_DTYPE = jnp.bfloat16
NEG_BIG = -1e30                      # finite "minus infinity" (NaN-safe online softmax)


def _round_up(x, m):
    return (x + m - 1) // m * m


def _pad2(a, shape):
    if tuple(a.shape) == tuple(shape):
        return a
    return jnp.pad(a, tuple((0, s - d) for s, d in zip(shape, a.shape)))


def _div_tile(dim, cap, align):
    """Largest multiple of `align` <= cap that divides dim, or None."""
    t = min(cap, dim)
    t -= t % align
    while t >= align:
        if dim % t == 0:
            return t
        t -= align
    return None


def _gelu_tanh(x):
    # TODO(synk): tanh-approx GELU (EUP tanh) instead of the exact-erf nn.GELU of the
    # reference; numerics differ by <~1e-3.
    c = 0.7978845608028654  # sqrt(2/pi)
    return 0.5 * x * (1.0 + jnp.tanh(c * (x + 0.044715 * x * x * x)))


# ----------------------------- fused linear kernel ---------------------------

def _linear_kernel(*refs, has_ln, has_bias, act, has_res, ln_eps):
    it = iter(refs)
    x_ref = next(it)
    w_ref = next(it)
    g_ref = next(it) if has_ln else None
    bln_ref = next(it) if has_ln else None
    b_ref = next(it) if has_bias else None
    r_ref = next(it) if has_res else None
    o_ref = next(it)
    acc_ref = next(it)
    xn_ref = next(it) if has_ln else None

    @pl.when(pl.program_id(2) == 0)
    def _():
        acc_ref[...] = jnp.zeros_like(acc_ref)

    if has_ln:
        # LayerNorm prologue; full feature axis is resident (K is not tiled when has_ln).
        # Normalized activations are cached in VMEM and reused for every N tile.
        @pl.when(pl.program_id(1) == 0)
        def _():
            x = x_ref[...].astype(jnp.float32)
            mu = jnp.mean(x, axis=-1, keepdims=True)
            var = jnp.mean(jnp.square(x - mu), axis=-1, keepdims=True)
            xn = (x - mu) * jax.lax.rsqrt(var + ln_eps)
            xn_ref[...] = (xn * g_ref[...] + bln_ref[...]).astype(xn_ref.dtype)
        xm = xn_ref[...]
    else:
        xm = x_ref[...]
        if xm.dtype != MXU_DTYPE:
            xm = xm.astype(MXU_DTYPE)

    wm = w_ref[...]
    if wm.dtype != MXU_DTYPE:
        wm = wm.astype(MXU_DTYPE)
    acc_ref[...] += jnp.dot(xm, wm, preferred_element_type=jnp.float32)

    @pl.when(pl.program_id(2) == pl.num_programs(2) - 1)
    def _():
        y = acc_ref[...]
        if has_bias:
            y = y + b_ref[...]
        if act == "gelu":
            y = _gelu_tanh(y)
        if has_res:
            y = y + r_ref[...].astype(jnp.float32)
        o_ref[...] = y.astype(o_ref.dtype)


def linear(x, w, b=None, *, ln=None, ln_eps=1e-5, activation=None, residual=None,
           tm=TM, tn=TN, tk=TK, out_dtype=None):
    """y = [LN(x)] @ W (+ b) [gelu] (+ residual).

    x: (M, K).  w: (K, N) (bf16 weights stream straight to the MXU).
    Tiled over (M, N, K) with an f32 VMEM accumulator; tiles are chosen as divisors
    of the dims when possible so no HBM pad/slice round trip happens in the hot path.
    """
    M, K = x.shape
    Kw, N = w.shape
    assert K == Kw
    out_dtype = MXU_DTYPE if out_dtype is None else out_dtype
    has_ln = ln is not None
    has_bias = b is not None
    has_res = residual is not None

    if M <= tm:
        tm_, M_pad = M, M
    else:
        tm_ = _div_tile(M, tm, 8) or ((tm // 8) * 8)
        M_pad = _round_up(M, tm_)
    if has_ln or K <= tk:
        tk_, K_pad = K, K            # LN prologue needs the whole feature axis
    else:
        tk_ = _div_tile(K, tk, 128) or ((tk // 128) * 128)
        K_pad = _round_up(K, tk_)
    if N <= tn:
        tn_, N_pad = N, N
    else:
        tn_ = _div_tile(N, tn, 128) or ((tn // 128) * 128)
        N_pad = _round_up(N, tn_)

    xp = _pad2(x, (M_pad, K_pad))
    wp = _pad2(w, (K_pad, N_pad))

    inputs = [xp, wp]
    in_specs = [
        pl.BlockSpec((tm_, tk_), lambda i, j, k: (i, k)),
        pl.BlockSpec((tk_, tn_), lambda i, j, k: (k, j)),
    ]
    if has_ln:
        g, bln = ln
        inputs += [g.reshape(1, K).astype(jnp.float32),
                   bln.reshape(1, K).astype(jnp.float32)]
        in_specs += [pl.BlockSpec((1, K_pad), lambda i, j, k: (0, 0)),
                     pl.BlockSpec((1, K_pad), lambda i, j, k: (0, 0))]
    if has_bias:
        inputs.append(_pad2(b.reshape(1, N).astype(jnp.float32), (1, N_pad)))
        in_specs.append(pl.BlockSpec((1, tn_), lambda i, j, k: (0, j)))
    if has_res:
        inputs.append(_pad2(residual, (M_pad, N_pad)))
        in_specs.append(pl.BlockSpec((tm_, tn_), lambda i, j, k: (i, j)))

    scratch = [pltpu.VMEM((tm_, tn_), jnp.float32)]
    if has_ln:
        scratch.append(pltpu.VMEM((tm_, K_pad), MXU_DTYPE))

    out = pl.pallas_call(
        functools.partial(_linear_kernel, has_ln=has_ln, has_bias=has_bias,
                          act=activation, has_res=has_res, ln_eps=ln_eps),
        out_shape=jax.ShapeDtypeStruct((M_pad, N_pad), out_dtype),
        grid=(M_pad // tm_, N_pad // tn_, K_pad // tk_),
        in_specs=in_specs,
        out_specs=pl.BlockSpec((tm_, tn_), lambda i, j, k: (i, j)),
        scratch_shapes=scratch,
        compiler_params=pltpu.CompilerParams(
            dimension_semantics=("parallel", "parallel", "arbitrary"),
            vmem_limit_bytes=VMEM_LIMIT_BYTES),
    )(*inputs)
    if M_pad != M or N_pad != N:
        out = out[:M, :N]
    return out


# ----------------------------- standalone LayerNorm ---------------------------

def _layernorm_kernel(x_ref, g_ref, b_ref, o_ref, *, eps):
    x = x_ref[...].astype(jnp.float32)
    mu = jnp.mean(x, axis=-1, keepdims=True)
    var = jnp.mean(jnp.square(x - mu), axis=-1, keepdims=True)
    y = (x - mu) * jax.lax.rsqrt(var + eps)
    o_ref[...] = (y * g_ref[...] + b_ref[...]).astype(o_ref.dtype)


def layernorm(x, g, b, eps=1e-5, tm=TM, out_dtype=None):
    out_dtype = MXU_DTYPE if out_dtype is None else out_dtype
    M, D = x.shape
    if M <= tm:
        tm_, M_pad = M, M
    else:
        tm_ = _div_tile(M, tm, 8) or ((tm // 8) * 8)
        M_pad = _round_up(M, tm_)
    xp = _pad2(x, (M_pad, D))
    out = pl.pallas_call(
        functools.partial(_layernorm_kernel, eps=eps),
        out_shape=jax.ShapeDtypeStruct((M_pad, D), out_dtype),
        grid=(M_pad // tm_,),
        in_specs=[pl.BlockSpec((tm_, D), lambda i: (i, 0)),
                  pl.BlockSpec((1, D), lambda i: (0, 0)),
                  pl.BlockSpec((1, D), lambda i: (0, 0))],
        out_specs=pl.BlockSpec((tm_, D), lambda i: (i, 0)),
        compiler_params=pltpu.CompilerParams(
            dimension_semantics=("parallel",),
            vmem_limit_bytes=VMEM_LIMIT_BYTES),
    )(xp, g.reshape(1, D).astype(jnp.float32), b.reshape(1, D).astype(jnp.float32))
    return out[:M] if M_pad != M else out


# ----------------------------- flash attention --------------------------------

def _flash_attn_kernel(q_ref, k_ref, v_ref, o_ref, m_sc, l_sc, acc_sc, *,
                       hpg, dh, tq, tk, causal, kv_len, kv_total):
    qi = pl.program_id(2)
    ki = pl.program_id(3)

    @pl.when(ki == 0)
    def _():
        m_sc[...] = jnp.full_like(m_sc, NEG_BIG)
        l_sc[...] = jnp.zeros_like(l_sc)
        acc_sc[...] = jnp.zeros_like(acc_sc)

    mask_cols = kv_len < kv_total          # static: padded keys must be masked
    need_mask = causal or mask_cols

    def compute():
        ok = None
        if need_mask:
            cols = ki * tk + jax.lax.broadcasted_iota(jnp.int32, (tq, tk), 1)
            if mask_cols:
                ok = cols < kv_len
            if causal:
                rows = qi * tq + jax.lax.broadcasted_iota(jnp.int32, (tq, tk), 0)
                c = cols <= rows
                ok = c if ok is None else jnp.logical_and(ok, c)
        for h in range(hpg):
            sl = slice(h * dh, (h + 1) * dh)
            qh = q_ref[0, :, sl]
            kh = k_ref[0, :, sl]
            vh = v_ref[0, :, sl]
            if qh.dtype != MXU_DTYPE:
                qh, kh, vh = (t.astype(MXU_DTYPE) for t in (qh, kh, vh))
            s = jax.lax.dot_general(qh, kh, (((1,), (1,)), ((), ())),
                                    preferred_element_type=jnp.float32)  # (tq, tk)
            if need_mask:
                s = jnp.where(ok, s, NEG_BIG)
            m_prev = m_sc[h]
            m_new = jnp.maximum(m_prev, jnp.max(s, axis=-1, keepdims=True))
            alpha = jnp.exp(m_prev - m_new)
            p = jnp.exp(s - m_new)
            l_sc[h] = alpha * l_sc[h] + jnp.sum(p, axis=-1, keepdims=True)
            acc_sc[:, sl] = alpha * acc_sc[:, sl] + jnp.dot(
                p.astype(MXU_DTYPE), vh, preferred_element_type=jnp.float32)
            m_sc[h] = m_new

    if causal:
        # Skip K/V tiles that are entirely in the future for this q tile.
        @pl.when(ki * tk < (qi + 1) * tq)
        def _():
            compute()
    else:
        compute()

    @pl.when(ki == pl.num_programs(3) - 1)
    def _():
        outs = []
        for h in range(hpg):
            sl = slice(h * dh, (h + 1) * dh)
            inv = pl.reciprocal(l_sc[h], approx=True)
            outs.append(acc_sc[:, sl] * inv)
        # Single lane-dense (tq, gw>=128) store per head group.
        o_ref[0] = jnp.concatenate(outs, axis=-1).astype(o_ref.dtype)


def _attention_jax(q_src, kv_src, n_head, d_model, q_off, k_off, v_off,
                   causal, kv_len, out_dtype):
    """Plain-XLA reference / fallback (no softmax scale: folded into the q projection)."""
    q = q_src[..., q_off:q_off + d_model].astype(jnp.float32)
    k = kv_src[..., k_off:k_off + d_model].astype(jnp.float32)
    v = kv_src[..., v_off:v_off + d_model].astype(jnp.float32)
    B, Tq, D = q.shape
    Tk = k.shape[1]
    dh = D // n_head
    qh = q.reshape(B, Tq, n_head, dh).transpose(0, 2, 1, 3)
    kh = k.reshape(B, Tk, n_head, dh).transpose(0, 2, 1, 3)
    vh = v.reshape(B, Tk, n_head, dh).transpose(0, 2, 1, 3)
    s = jnp.einsum('bhqd,bhkd->bhqk', qh, kh)
    iq = jnp.arange(Tq)[:, None]
    ik = jnp.arange(Tk)[None, :]
    ok = jnp.ones((Tq, Tk), bool)
    if causal:
        ok = jnp.logical_and(ok, ik <= iq)
    if kv_len < Tk:
        ok = jnp.logical_and(ok, ik < kv_len)
    s = jnp.where(ok, s, NEG_BIG)
    p = jax.nn.softmax(s, axis=-1)
    o = jnp.einsum('bhqk,bhkd->bhqd', p, vh)
    return o.transpose(0, 2, 1, 3).reshape(B, Tq, D).astype(out_dtype)


def _attn_tile(T, cap):
    t = min(cap, T)
    t -= t % 8
    while t >= 8:
        if T % t == 0:
            return t
        t -= 8
    return T


def attention(q_src, kv_src, n_head, d_model, q_off, k_off, v_off, *,
              causal=False, kv_len=None, out_dtype=None, tq=None, tk=None):
    """Flash-style multi-head attention reading q/k/v as feature slices of packed
    projections (no JAX-side head split / transpose, no HBM mask stream).

    q_src: (B, Tq, Dq) with q at feature offset q_off (width d_model).
    kv_src: (B, Tk, Dkv) with k at k_off, v at v_off.
    kv_len: number of valid keys (<= Tk); keys beyond it are masked (padded rows).
    """
    B, Tq, Dq = q_src.shape
    _, Tk, Dkv = kv_src.shape
    out_dtype = MXU_DTYPE if out_dtype is None else out_dtype
    kv_len = Tk if kv_len is None else kv_len
    dh = d_model // n_head
    hpg = max(1, 128 // dh)
    while n_head % hpg:
        hpg -= 1
    gw = hpg * dh

    aligned = (gw % 128 == 0 and q_off % gw == 0 and k_off % gw == 0 and
               v_off % gw == 0 and Dq % gw == 0 and Dkv % gw == 0 and
               Tq % 8 == 0 and Tk % 8 == 0)
    if not aligned:
        # TODO(synk): non-128-aligned head groups / ragged sequences fall back to XLA.
        return _attention_jax(q_src, kv_src, n_head, d_model, q_off, k_off, v_off,
                              causal, kv_len, out_dtype)

    tq = tq or _attn_tile(Tq, ATTN_TQ)
    tk = tk or _attn_tile(Tk, ATTN_TK)
    ngroups = n_head // hpg
    qb, kb, vb = q_off // gw, k_off // gw, v_off // gw

    return pl.pallas_call(
        functools.partial(_flash_attn_kernel, hpg=hpg, dh=dh, tq=tq, tk=tk,
                          causal=causal, kv_len=kv_len, kv_total=Tk),
        out_shape=jax.ShapeDtypeStruct((B, Tq, d_model), out_dtype),
        grid=(B, ngroups, Tq // tq, Tk // tk),
        in_specs=[pl.BlockSpec((1, tq, gw), lambda b, g, qi, ki: (b, qi, qb + g)),
                  pl.BlockSpec((1, tk, gw), lambda b, g, qi, ki: (b, ki, kb + g)),
                  pl.BlockSpec((1, tk, gw), lambda b, g, qi, ki: (b, ki, vb + g))],
        out_specs=pl.BlockSpec((1, tq, gw), lambda b, g, qi, ki: (b, qi, g)),
        scratch_shapes=[pltpu.VMEM((hpg, tq, 1), jnp.float32),
                        pltpu.VMEM((hpg, tq, 1), jnp.float32),
                        pltpu.VMEM((tq, gw), jnp.float32)],
        compiler_params=pltpu.CompilerParams(
            dimension_semantics=("parallel", "parallel", "parallel", "arbitrary"),
            vmem_limit_bytes=VMEM_LIMIT_BYTES),
    )(q_src, kv_src, kv_src)


# ----------------------------- model plumbing -------------------------------

@dataclass
class ModelDimensions:
    n_mels: int
    n_audio_ctx: int
    n_audio_state: int
    n_audio_head: int
    n_audio_layer: int
    n_vocab: int
    n_text_ctx: int
    n_text_state: int
    n_text_head: int
    n_text_layer: int


def sinusoids(length, channels, max_timescale=10000):
    assert channels % 2 == 0
    log_timescale_increment = np.log(max_timescale) / (channels // 2 - 1)
    inv_timescales = np.exp(-log_timescale_increment * np.arange(channels // 2))
    scaled_time = np.arange(length)[:, None] * inv_timescales[None, :]
    return jnp.asarray(
        np.concatenate([np.sin(scaled_time), np.cos(scaled_time)], axis=1), jnp.float32)


class KeyIter:
    def __init__(self, key):
        self.key = key

    def __next__(self):
        self.key, sub = jax.random.split(self.key)
        return sub


def _randn(kit, shape, scale=0.02):
    return scale * jax.random.normal(next(kit), shape, dtype=jnp.float32)


def _bf16(a):
    return a.astype(jnp.bfloat16)


def init_self_mha(kit, D, n_head):
    dh = D // n_head
    scale = float(dh) ** -0.5                 # folded into the q projection
    wq, bq = _randn(kit, (D, D)), _randn(kit, (D,))
    wk = _randn(kit, (D, D))                  # key proj has no bias
    wv, bv = _randn(kit, (D, D)), _randn(kit, (D,))
    wo, bo = _randn(kit, (D, D)), _randn(kit, (D,))
    return dict(
        w_qkv=_bf16(jnp.concatenate([wq * scale, wk, wv], axis=1)),
        b_qkv=jnp.concatenate([bq * scale, jnp.zeros((D,), jnp.float32), bv]),
        wo=_bf16(wo), bo=bo)


def init_cross_mha(kit, D, n_head):
    dh = D // n_head
    scale = float(dh) ** -0.5
    wq, bq = _randn(kit, (D, D)), _randn(kit, (D,))
    wk = _randn(kit, (D, D))
    wv, bv = _randn(kit, (D, D)), _randn(kit, (D,))
    wo, bo = _randn(kit, (D, D)), _randn(kit, (D,))
    return dict(
        wq=_bf16(wq * scale), bq=bq * scale,
        w_kv=_bf16(jnp.concatenate([wk, wv], axis=1)),
        b_kv=jnp.concatenate([jnp.zeros((D,), jnp.float32), bv]),
        wo=_bf16(wo), bo=bo)


def init_block(kit, D, n_head, cross):
    p = dict(attn=init_self_mha(kit, D, n_head),
             attn_ln_g=jnp.ones((D,), jnp.float32), attn_ln_b=jnp.zeros((D,), jnp.float32),
             mlp_w1=_bf16(_randn(kit, (D, 4 * D))), mlp_b1=_randn(kit, (4 * D,)),
             mlp_w2=_bf16(_randn(kit, (4 * D, D))), mlp_b2=_randn(kit, (D,)),
             mlp_ln_g=jnp.ones((D,), jnp.float32), mlp_ln_b=jnp.zeros((D,), jnp.float32))
    if cross:
        p["cross_attn"] = init_cross_mha(kit, D, n_head)
        p["cross_ln_g"] = jnp.ones((D,), jnp.float32)
        p["cross_ln_b"] = jnp.zeros((D,), jnp.float32)
    return p


def init_params(key, dims: ModelDimensions):
    kit = KeyIter(key)
    Da, Dt = dims.n_audio_state, dims.n_text_state
    V_pad = _round_up(dims.n_vocab, 128)
    tok_emb = _randn(kit, (dims.n_vocab, Dt))
    tok_emb_t = jnp.zeros((Dt, V_pad), jnp.float32).at[:, :dims.n_vocab].set(tok_emb.T)
    return dict(
        # encoder stem: Conv1d(k=1) weights stored as (C_in, C_out); tiny -> stay f32/XLA
        w_init=_randn(kit, (2, dims.n_mels)), b_init=_randn(kit, (dims.n_mels,)),
        w_conv1=_randn(kit, (dims.n_mels, Da)), b_conv1=_randn(kit, (Da,)),
        w_conv2=_bf16(_randn(kit, (Da, Da))), b_conv2=_randn(kit, (Da,)),
        pos_emb_audio=sinusoids(dims.n_audio_ctx, Da),
        enc_blocks=[init_block(kit, Da, dims.n_audio_head, cross=False)
                    for _ in range(dims.n_audio_layer)],
        ln_post_g=jnp.ones((Da,), jnp.float32), ln_post_b=jnp.zeros((Da,), jnp.float32),
        # decoder (tied embedding kept as bf16 gather table + bf16 pre-transposed copy)
        tok_emb=_bf16(tok_emb),
        tok_emb_t=_bf16(tok_emb_t),
        pos_emb_text=_randn(kit, (dims.n_text_ctx, Dt)),
        dec_blocks=[init_block(kit, Dt, dims.n_text_head, cross=True)
                    for _ in range(dims.n_text_layer)],
        ln_g=jnp.ones((Dt,), jnp.float32), ln_b=jnp.zeros((Dt,), jnp.float32))


def residual_block(x, p, n_head, *, causal, x_len, xa=None, xa_len=None):
    B, T, D = x.shape
    x2 = x.reshape(B * T, D)

    # Self-attention: LN fused into the packed QKV projection; residual fused
    # into the output projection epilogue; causal mask generated in-kernel.
    qkv = linear(x2, p["attn"]["w_qkv"], p["attn"]["b_qkv"],
                 ln=(p["attn_ln_g"], p["attn_ln_b"]))
    qkv3 = qkv.reshape(B, T, 3 * D)
    a = attention(qkv3, qkv3, n_head, D, q_off=0, k_off=D, v_off=2 * D,
                  causal=causal, kv_len=x_len)
    x2 = linear(a.reshape(B * T, D), p["attn"]["wo"], p["attn"]["bo"], residual=x2)

    # Cross-attention (decoder): q from x (LN fused), packed KV from xa.
    if xa is not None:
        ca = p["cross_attn"]
        Bk, Tk, _ = xa.shape
        q = linear(x2, ca["wq"], ca["bq"], ln=(p["cross_ln_g"], p["cross_ln_b"]))
        kv = linear(xa.reshape(Bk * Tk, D), ca["w_kv"], ca["b_kv"])
        a = attention(q.reshape(B, T, D), kv.reshape(B, Tk, 2 * D), n_head, D,
                      q_off=0, k_off=0, v_off=D, causal=False, kv_len=xa_len)
        x2 = linear(a.reshape(B * T, D), ca["wo"], ca["bo"], residual=x2)

    # MLP: LN + W1 + GELU fused; W2 + residual fused.
    h = linear(x2, p["mlp_w1"], p["mlp_b1"],
               ln=(p["mlp_ln_g"], p["mlp_ln_b"]), activation="gelu")
    x2 = linear(h, p["mlp_w2"], p["mlp_b2"], residual=x2)
    return x2.reshape(B, T, D)


def encoder_forward(mel, p, dims):
    B, Cin, L = mel.shape                                  # NCL input, Cin == 2
    Da = dims.n_audio_state
    # TODO(synk): tiny stem projections (K=2 and K=n_mels) stay in plain XLA
    # (lane-sparse, negligible FLOPs) rather than the tiled Pallas matmul.
    x = mel.transpose(0, 2, 1).astype(jnp.float32)          # pointwise conv == per-pos linear
    x = jax.nn.gelu(x @ p["w_init"] + p["b_init"], approximate=False)   # -> n_mels
    x = jax.nn.gelu(x @ p["w_conv1"] + p["b_conv1"], approximate=False)  # -> n_state
    x = linear(x.reshape(B * L, Da), p["w_conv2"], p["b_conv2"], activation="gelu")
    x = x.reshape(B, L, Da) + p["pos_emb_audio"][None, :, :]
    x = x.astype(MXU_DTYPE)

    L_pad = _round_up(L, 8)                                 # pad once; stays padded
    if L_pad != L:
        x = jnp.pad(x, ((0, 0), (0, L_pad - L), (0, 0)))
    for bp in p["enc_blocks"]:
        x = residual_block(x, bp, dims.n_audio_head, causal=False, x_len=L)
    xa = layernorm(x.reshape(B * L_pad, Da), p["ln_post_g"], p["ln_post_b"])
    return xa.reshape(B, L_pad, Da), L


def decoder_forward(tokens, xa, xa_len, p, dims):
    B, T = tokens.shape
    D = dims.n_text_state
    # TODO(synk): token-embedding gather stays in plain JAX (glue, not hot path).
    x = jnp.take(p["tok_emb"], tokens, axis=0).astype(jnp.float32) + p["pos_emb_text"][:T]
    x = x.astype(MXU_DTYPE)
    T_pad = _round_up(T, 8)
    if T_pad != T:
        x = jnp.pad(x, ((0, 0), (0, T_pad - T), (0, 0)))
    for bp in p["dec_blocks"]:
        x = residual_block(x, bp, dims.n_text_head, causal=True, x_len=T,
                           xa=xa, xa_len=xa_len)
    # Final LN fused as prologue; logits contract against the one-time bf16
    # pre-transposed (D, V_pad) embedding copy (no per-step transposes).
    V_pad = p["tok_emb_t"].shape[1]
    logits = linear(x.reshape(B * T_pad, D), p["tok_emb_t"], None,
                    ln=(p["ln_g"], p["ln_b"]), tn=1024, out_dtype=jnp.float32)
    return logits.reshape(B, T_pad, V_pad)[:, :T, :dims.n_vocab]


def transformer_forward(mel, tokens, p, dims):
    xa, xa_len = encoder_forward(mel, p, dims)
    return decoder_forward(tokens, xa, xa_len, p, dims)


# --------------------------------- demo --------------------------------------

if __name__ == "__main__":
    key = jax.random.PRNGKey(0)
    ks = jax.random.split(key, 9)

    # 1) Linear kernel self-check (odd sizes -> padding fallback + multi-step K).
    xs = jax.random.normal(ks[0], (70, 300), jnp.float32)
    ws = jax.random.normal(ks[1], (300, 260), jnp.float32)
    bs = jax.random.normal(ks[2], (260,), jnp.float32)
    ref = jnp.dot(xs.astype(MXU_DTYPE), ws.astype(MXU_DTYPE),
                  preferred_element_type=jnp.float32) + bs
    got = linear(xs, ws, bs, tm=32, tn=128, tk=128, out_dtype=jnp.float32)
    np.testing.assert_allclose(np.asarray(got), np.asarray(ref), rtol=2e-2, atol=2e-2)

    # 2) Flash-attention self-check vs XLA reference: causal, multiple K/V tiles.
    B0, T0, H0, D0 = 1, 32, 4, 128
    dh0 = D0 // H0
    qkv0 = jax.random.normal(ks[3], (B0, T0, 3 * D0), jnp.float32)
    qkv0 = qkv0.at[..., :D0].multiply(dh0 ** -0.5).astype(jnp.bfloat16)
    got_a = attention(qkv0, qkv0, H0, D0, 0, D0, 2 * D0, causal=True,
                      tq=8, tk=8, out_dtype=jnp.float32)
    ref_a = _attention_jax(qkv0, qkv0, H0, D0, 0, D0, 2 * D0, True, T0, jnp.float32)
    np.testing.assert_allclose(np.asarray(got_a), np.asarray(ref_a), rtol=2e-2, atol=2e-2)

    # 3) Cross-style check with kv-length masking (padded keys ignored).
    q0 = (jax.random.normal(ks[4], (2, 8, D0), jnp.float32) * dh0 ** -0.5).astype(jnp.bfloat16)
    kv0 = jax.random.normal(ks[5], (2, 32, 2 * D0), jnp.float32).astype(jnp.bfloat16)
    got_c = attention(q0, kv0, H0, D0, 0, 0, D0, causal=False, kv_len=24,
                      tq=8, tk=8, out_dtype=jnp.float32)
    ref_c = _attention_jax(q0, kv0, H0, D0, 0, 0, D0, False, 24, jnp.float32)
    np.testing.assert_allclose(np.asarray(got_c), np.asarray(ref_c), rtol=2e-2, atol=2e-2)

    # 4) Full model forward at small shapes.
    dims = ModelDimensions(
        n_mels=16, n_audio_ctx=32, n_audio_state=128, n_audio_head=4, n_audio_layer=2,
        n_vocab=256, n_text_ctx=32, n_text_state=128, n_text_head=4, n_text_layer=2)
    params = init_params(ks[6], dims)

    B, T = 2, 8
    mel = jax.random.normal(ks[7], (B, 2, dims.n_audio_ctx), jnp.float32)   # (B, 2, L)
    tokens = jax.random.randint(ks[8], (B, T), 0, dims.n_vocab, dtype=jnp.int32)

    fwd = jax.jit(lambda m, t: transformer_forward(m, t, params, dims))
    logits = fwd(mel, tokens)
    jax.block_until_ready(logits)
    assert logits.shape == (B, T, dims.n_vocab) and logits.dtype == jnp.float32
    assert bool(jnp.isfinite(logits).all())
    print("KERNEL_OK")
</pallas_src>

<mosaic_0001>
module attributes {stable_mosaic.version = 11 : i64} {
  func.func @_linear_kernel(%arg0: i32, %arg1: i32, %arg2: i32, %arg3: memref<32x128xf32, #tpu.memory_space<vmem>>, %arg4: memref<128x128xf32, #tpu.memory_space<vmem>>, %arg5: memref<1x128xf32, #tpu.memory_space<vmem>>, %arg6: memref<32x128xf32, #tpu.memory_space<vmem>>, %arg7: memref<32x128xf32, #tpu.memory_space<vmem>>) attributes {dimension_semantics = [#tpu.dimension_semantics<parallel>, #tpu.dimension_semantics<parallel>, #tpu.dimension_semantics<arbitrary>], iteration_bounds = array<i64: 3, 3, 3>, scalar_prefetch = 0 : i64, scratch_operands = 1 : i64, tpu.core_type = #tpu.core_type<tc>, window_params = [{transform_indices = @transform_0, window_bounds = array<i64: 32, 128>}, {transform_indices = @transform_1, window_bounds = array<i64: 128, 128>}, {transform_indices = @transform_2, window_bounds = array<i64: 1, 128>}, {transform_indices = @transform_3, window_bounds = array<i64: 32, 128>}]} {
    %c0_i32 = arith.constant 0 : i32
    %0 = arith.cmpi eq, %arg2, %c0_i32 : i32
    %1 = arith.extui %0 : i1 to i32
    %c0_i32_0 = arith.constant 0 : i32
    %2 = arith.cmpi ne, %1, %c0_i32_0 : i32
    scf.if %2 {
      %cst_9 = arith.constant 0.000000e+00 : f32
      %14 = vector.broadcast %cst_9 : f32 to vector<32x128xf32>
      %c0_10 = arith.constant 0 : index
      %c0_11 = arith.constant 0 : index
      %15 = vector.load %arg7[%c0_10, %c0_11] : memref<32x128xf32, #tpu.memory_space<vmem>>, vector<32x128xf32>
      tpu.vector_store %arg7[%c0_10, %c0_11], %14 {strides = array<i32>} : memref<32x128xf32, #tpu.memory_space<vmem>>, vector<32x128xf32>,
    } else {
    }
    %c0 = arith.constant 0 : index
    %c0_1 = arith.constant 0 : index
    %3 = vector.load %arg3[%c0, %c0_1] : memref<32x128xf32, #tpu.memory_space<vmem>>, vector<32x128xf32>
    %4 = arith.truncf %3 : vector<32x128xf32> to vector<32x128xbf16>
    %c0_2 = arith.constant 0 : index
    %c0_3 = arith.constant 0 : index
    %5 = vector.load %arg4[%c0_2, %c0_3] : memref<128x128xf32, #tpu.memory_space<vmem>>, vector<128x128xf32>
    %6 = arith.truncf %5 : vector<128x128xf32> to vector<128x128xbf16>
    %c0_4 = arith.constant 0 : index
    %c0_5 = arith.constant 0 : index
    %7 = vector.load %arg7[%c0_4, %c0_5] : memref<32x128xf32, #tpu.memory_space<vmem>>, vector<32x128xf32>
    %cst = arith.constant dense<0.000000e+00> : vector<32x128xf32>
    %8 = tpu.matmul %4, %6, %cst {dimension_numbers = #tpu.dot_dimension_numbers<[1], [0], [0], [1], [0, 0, 1, 1], [], []>} : vector<32x128xbf16>, vector<128x128xbf16>, vector<32x128xf32> -> vector<32x128xf32>
    %9 = arith.addf %7, %8 : vector<32x128xf32>
    %c0_6 = arith.constant 0 : index
    %c0_7 = arith.constant 0 : index
    %10 = vector.load %arg7[%c0_6, %c0_7] : memref<32x128xf32, #tpu.memory_space<vmem>>, vector<32x128xf32>
    tpu.vector_store %arg7[%c0_6, %c0_7], %9 {strides = array<i32>} : memref<32x128xf32, #tpu.memory_space<vmem>>, vector<32x128xf32>,
    %c2_i32 = arith.constant 2 : i32
    %11 = arith.cmpi eq, %arg2, %c2_i32 : i32
    %12 = arith.extui %11 : i1 to i32
    %c0_i32_8 = arith.constant 0 : i32
    %13 = arith.cmpi ne, %12, %c0_i32_8 : i32
    scf.if %13 {
      %c0_9 = arith.constant 0 : index
      %c0_10 = arith.constant 0 : index
      %14 = vector.load %arg7[%c0_9, %c0_10] : memref<32x128xf32, #tpu.memory_space<vmem>>, vector<32x128xf32>
      %c0_11 = arith.constant 0 : index
      %c0_12 = arith.constant 0 : index
      %15 = vector.load %arg5[%c0_11, %c0_12] : memref<1x128xf32, #tpu.memory_space<vmem>>, vector<1x128xf32>
      %16 = vector.broadcast %15 : vector<1x128xf32> to vector<32x128xf32>
      %17 = arith.addf %14, %16 : vector<32x128xf32>
      %c0_13 = arith.constant 0 : index
      %c0_14 = arith.constant 0 : index
      %18 = vector.load %arg6[%c0_13, %c0_14] : memref<32x128xf32, #tpu.memory_space<vmem>>, vector<32x128xf32>
      tpu.vector_store %arg6[%c0_13, %c0_14], %17 {strides = array<i32>} : memref<32x128xf32, #tpu.memory_space<vmem>>, vector<32x128xf32>,
    } else {
    }
    return
  }
  func.func @transform_0(%arg0: i32, %arg1: i32, %arg2: i32) -> (i32, i32) {
    %c0_i32 = arith.constant 0 : i32
    return %arg0, %arg2 : i32, i32
  }
  func.func @transform_1(%arg0: i32, %arg1: i32, %arg2: i32) -> (i32, i32) {
    %c0_i32 = arith.constant 0 : i32
    return %arg2, %arg1 : i32, i32
  }
  func.func @transform_2(%arg0: i32, %arg1: i32, %arg2: i32) -> (i32, i32) {
    %c0_i32 = arith.constant 0 : i32
    %c0_i32_0 = arith.constant 0 : i32
    return %c0_i32, %arg1 : i32, i32
  }
  func.func @transform_3(%arg0: i32, %arg1: i32, %arg2: i32) -> (i32, i32) {
    %c0_i32 = arith.constant 0 : i32
    return %arg0, %arg1 : i32, i32
  }
}

</mosaic_0001>

<llo_original>
// kernel: tpu_custom_call.1
$region0: #{tpu_custom_call.1}
  #allocation0 [shape = 'u32[]', space=smem, size = 0x4, offset = 0x4, fixed_abs, tag = 'smem constant byte address 0x4 - core index']
  #allocation1 [shape = 'u32[144,128]{1,0:T(1,128)}', space=vmem, size = 0x12000, scoped, tag = 'internal scratch']
  #allocation2 [shape = 'f32[32,128]{1,0:T(8,128)}', space=vmem, size = 0x4000, scoped, tag = 'scratch operand']
  %s0 = inlined_call_operand.hbm [shape: f32[96,384], index: 0, kind: input, shape index: {}]
  %s1 = inlined_call_operand.hbm [shape: f32[384,384], index: 1, kind: input, shape index: {}]
  %s2 = inlined_call_operand.vmem [shape: f32[1,384], index: 2, kind: input, shape index: {}]
  %s3 = inlined_call_operand.hbm [shape: f32[96,384], index: 3, kind: output, shape index: {}]
  %s4 = sld [smem:[#allocation0]]
  $region61: #{tpu_custom_call.1} parent=0
    _
  %s6 = ssub.s32 1, %s4
  %s7 = scalar_select 0, %s6, %s4
  $region1: #{tpu_custom_call.1} parent=0
    #allocation3 [shape = 'u8[32768]{0}', space=vmem, size = 0x8000, scoped, tag = 'input window, operand 0']
    #allocation4 [shape = 's32[2]{0}', space=sflag, size = 0x8, scoped, tag = 'scoped memory for tpu_custom_call.1']
    #allocation5 [shape = 's32[2]{0}', space=sflag, size = 0x8, scoped, tag = 'scoped memory for tpu_custom_call.1']
    #allocation6 [shape = 'u8[131072]{0}', space=vmem, size = 0x20000, scoped, tag = 'input window, operand 1']
    #allocation7 [shape = 's32[2]{0}', space=sflag, size = 0x8, scoped, tag = 'scoped memory for tpu_custom_call.1']
    #allocation8 [shape = 'u8[32768]{0}', space=vmem, size = 0x8000, scoped, tag = 'output window, operand 0']
    %8 = vsyncpa [#allocation4], 0
    %s9 = scalar_lea.sflag [#allocation4], 1
    %10 = vsyncpa %s9, 0
    %11 = vsyncpa [#allocation7], 0
    %s12 = scalar_lea.sflag [#allocation7], 1
    %13 = vsyncpa %s12, 0
    %14 = vsyncpa [#allocation5], 0
    %s15 = scalar_lea.sflag [#allocation5], 1
    %16 = vsyncpa %s15, 0
    loop: start=0, step=1, limit=29
    $region2: #{tpu_custom_call.1} parent=1 // loop_pre_header
      _
    $region3: #{tpu_custom_call.1} parent=1 // loop_header
      %s18 = sphi 0, %s22
      %p19 = scmp.ge.s32.totalorder %s18, 29
      %s25 = sphi 0, %s44
      %s26 = sphi 0, %s40
      %s27 = sphi 0, %s36
      %s28 = sphi 0, %s25
      %s29 = sphi 0, %s26
      %s30 = sphi 0, %s27
      %s31 = sphi 0, %s28
      %s32 = sphi 0, %s29
      %s33 = sphi 0, %s30
      %s49 = sphi 0, %s51
      %s52 = sphi 0, %s49
      %s53 = sphi 0, %s52
      %s69 = sphi 0, %s53
      %s77 = sphi 0, %s79
      %s80 = sphi 0, %s77
      %s81 = sphi 0, %s80
      %s97 = sphi 0, %s81
      %s103 = sphi 0, %s105
      %s106 = sphi 0, %s103
      %s107 = sphi 0, %s106
      %s123 = sphi 0, %s107
      %s131 = sphi 0, %s133
      %s134 = sphi 0, %s131
      %s135 = sphi 0, %s134
      %s151 = sphi 0, %s135
    $region4: #{tpu_custom_call.1} parent=1 // loop_header_branch
      %21 = sbr.rel (%p19) target = $region8
    $region5: #{tpu_custom_call.1} parent=1 // loop_body
      %s23 = ssub.s32 %s18, 1
      %s24 = ssub.s32 %s18, 2
      %s34 = sadd.s32 1, %s27
      %p35 = scmp.ge.s32.totalorder %s34, 3
      %s36 = scalar_select %p35, 0, %s34
      %s37 = sadd.s32 1, %s26
      %s38 = scalar_select %p35, %s37, %s26
      %p39 = scmp.ge.s32.totalorder %s38, 3
      %s40 = scalar_select %p39, 0, %s38
      %s41 = sadd.s32 1, %s25
      %s42 = scalar_select %p39, %s41, %s25
      %p43 = scmp.ge.s32.totalorder %s42, 3
      %s44 = scalar_select %p43, 0, %s42
      %s45 = ssub.s32 %s25, %s44
      %s46 = ssub.s32 %s27, %s36
      %s47 = sor.u32 %s45, %s46
      %p48 = scmp.eq.s32.totalorder %s47, 0
      %s50 = sadd.s32 %s49, 1
      %s51 = scalar_select %p48, %s49, %s50
      %p54 = pneg %p48
      %p55 = scmp.eq.s32.totalorder %s18, 26
      %p56 = por %p54, %p55
      %p57 = scmp.ne.s32.totalorder %s49, %s52
      %p58 = scmp.eq.s32.totalorder %s18, 0
      %p59 = por %p57, %p58
      %p60 = scmp.ne.s32.totalorder %s49, %s52
      %p61 = scmp.eq.s32.totalorder %s23, 26
      %p62 = por %p60, %p61
      %p63 = scmp.ne.s32.totalorder %s52, %s53
      %p64 = scmp.eq.s32.totalorder %s23, 0
      %p65 = por %p63, %p64
      %p66 = scmp.ne.s32.totalorder %s52, %s53
      %p67 = scmp.eq.s32.totalorder %s24, 26
      %p68 = por %p66, %p67
      %p70 = scmp.ne.s32.totalorder %s53, %s69
      %p71 = scmp.eq.s32.totalorder %s24, 0
      %p72 = por %p70, %p71
      %s73 = ssub.s32 %s27, %s36
      %s74 = ssub.s32 %s26, %s40
      %s75 = sor.u32 %s73, %s74
      %p76 = scmp.eq.s32.totalorder %s75, 0
      %s78 = sadd.s32 %s77, 1
      %s79 = scalar_select %p76, %s77, %s78
      %p82 = pneg %p76
      %p83 = scmp.eq.s32.totalorder %s18, 26
      %p84 = por %p82, %p83
      %p85 = scmp.ne.s32.totalorder %s77, %s80
      %p86 = scmp.eq.s32.totalorder %s18, 0
      %p87 = por %p85, %p86
      %p88 = scmp.ne.s32.totalorder %s77, %s80
      %p89 = scmp.eq.s32.totalorder %s23, 26
      %p90 = por %p88, %p89
      %p91 = scmp.ne.s32.totalorder %s80, %s81
      %p92 = scmp.eq.s32.totalorder %s23, 0
      %p93 = por %p91, %p92
      %p94 = scmp.ne.s32.totalorder %s80, %s81
      %p95 = scmp.eq.s32.totalorder %s24, 26
      %p96 = por %p94, %p95
      %p98 = scmp.ne.s32.totalorder %s81, %s97
      %p99 = scmp.eq.s32.totalorder %s24, 0
      %p100 = por %p98, %p99
      %s101 = ssub.s32 %s26, %s40
      %p102 = scmp.eq.s32.totalorder %s101, 0
      %s104 = sadd.s32 %s103, 1
      %s105 = scalar_select %p102, %s103, %s104
      %p108 = pneg %p102
      %p109 = scmp.eq.s32.totalorder %s18, 26
      %p110 = por %p108, %p109
      %p111 = scmp.ne.s32.totalorder %s103, %s106
      %p112 = scmp.eq.s32.totalorder %s18, 0
      %p113 = por %p111, %p112
      %p114 = scmp.ne.s32.totalorder %s103, %s106
      %p115 = scmp.eq.s32.totalorder %s23, 26
      %p116 = por %p114, %p115
      %p117 = scmp.ne.s32.totalorder %s106, %s107
      %p118 = scmp.eq.s32.totalorder %s23, 0
      %p119 = por %p117, %p118
      %p120 = scmp.ne.s32.totalorder %s106, %s107
      %p121 = scmp.eq.s32.totalorder %s24, 26
      %p122 = por %p120, %p121
      %p124 = scmp.ne.s32.totalorder %s107, %s123
      %p125 = scmp.eq.s32.totalorder %s24, 0
      %p126 = por %p124, %p125
      %s127 = ssub.s32 %s25, %s44
      %s128 = ssub.s32 %s26, %s40
      %s129 = sor.u32 %s127, %s128
      %p130 = scmp.eq.s32.totalorder %s129, 0
      %s132 = sadd.s32 %s131, 1
      %s133 = scalar_select %p130, %s131, %s132
      %p136 = pneg %p130
      %p137 = scmp.eq.s32.totalorder %s18, 26
      %p138 = por %p136, %p137
      %p139 = scmp.ne.s32.totalorder %s131, %s134
      %p140 = scmp.eq.s32.totalorder %s18, 0
      %p141 = por %p139, %p140
      %p142 = scmp.ne.s32.totalorder %s131, %s134
      %p143 = scmp.eq.s32.totalorder %s23, 26
      %p144 = por %p142, %p143
      %p145 = scmp.ne.s32.totalorder %s134, %s135
      %p146 = scmp.eq.s32.totalorder %s23, 0
      %p147 = por %p145, %p146
      %p148 = scmp.ne.s32.totalorder %s134, %s135
      %p149 = scmp.eq.s32.totalorder %s24, 26
      %p150 = por %p148, %p149
      %p152 = scmp.ne.s32.totalorder %s135, %s151
      %p153 = scmp.eq.s32.totalorder %s24, 0
      %p154 = por %p152, %p153
      %p155 = scmp.le.s32.totalorder 1, %s18
      %p156 = scmp.lt.s32.totalorder %s18, 28
      %p157 = pnand %p155, %p156
      %p158 = pneg %p157
      // Predicated region
      $region9: #{tpu_custom_call.1} parent=5 // pred_check
        _
      $region10: #{tpu_custom_call.1} parent=5 // pred_check_branch
        %160 = sbr.rel (%p157) target = $region12
      $region11: #{tpu_custom_call.1} parent=5 // pred_region
        %s161 = ssub.s32 %s18, 1
      $region12: #{tpu_custom_call.1} parent=5 // pred_fallthru
        _
      %p162 = scmp.lt.s32.totalorder %s18, 27
      // Predicated region
      $region13: #{tpu_custom_call.1} parent=5 // pred_check
        %p163 = pneg %p162
      $region14: #{tpu_custom_call.1} parent=5 // pred_check_branch
        %165 = sbr.rel (%p163) target = $region16
      $region15: #{tpu_custom_call.1} parent=5 // pred_region
        // Predicated region
        $region17: #{tpu_custom_call.1} parent=15 // pred_check
          %p166 = pneg %p59
        $region18: #{tpu_custom_call.1} parent=15 // pred_check_branch
          %168 = sbr.rel (%p166) target = $region20
        $region19: #{tpu_custom_call.1} parent=15 // pred_region
          %s169 = sand.u32 %s49, 1
          %s170 = scalar_lea.sflag [#allocation4], %s169
          %s171 = sand.u32 %s49, 1
          %s172 = smul.addr %s171, 32
          %s173 = scalar_lea.vmem [#allocation3], %s172
          %s174 = smul.u32 4, %s25
          %s176 = ssub.s32 512, 512
          %177 = vsyncadd %s170, %s176
          %s178 = smul.addr %s174, 3
          %s179 = sadd.s32 %s27, %s178
          %s180 = smul.addr %s179, 128
          %s181 = scalar_lea.hbm %s0, %s180
          %s182 = sshll.u32 %s173, 4
          %s183 = int_to_ptr.vmem [resolvable:$true] %s182
          %188 = dma.hbm_to_vmem [thread:$0]  %s181, 512, %s183, %s170, 384, 128, 8
        $region20: #{tpu_custom_call.1} parent=15 // pred_fallthru
          _
        // Predicated region
        $region21: #{tpu_custom_call.1} parent=15 // pred_check
          %p189 = pneg %p87
        $region22: #{tpu_custom_call.1} parent=15 // pred_check_branch
          %191 = sbr.rel (%p189) target = $region24
        $region23: #{tpu_custom_call.1} parent=15 // pred_region
          %s192 = sand.u32 %s77, 1
          %s193 = scalar_lea.sflag [#allocation7], %s192
          %s194 = sand.u32 %s77, 1
          %s195 = smul.addr %s194, 128
          %s196 = scalar_lea.vmem [#allocation6], %s195
          %s197 = smul.u32 16, %s27
          %s199 = ssub.s32 2048, 2048
          %200 = vsyncadd %s193, %s199
          %s201 = smul.addr %s197, 3
          %s202 = sadd.s32 %s26, %s201
          %s203 = smul.addr %s202, 128
          %s204 = scalar_lea.hbm %s1, %s203
          %s205 = sshll.u32 %s196, 4
          %s206 = int_to_ptr.vmem [resolvable:$true] %s205
          %211 = dma.hbm_to_vmem [thread:$0]  %s204, 2048, %s206, %s193, 384, 128, 8
        $region24: #{tpu_custom_call.1} parent=15 // pred_fallthru
          _
        // Predicated region
        $region25: #{tpu_custom_call.1} parent=15 // pred_check
          %p212 = pneg %p113
        $region26: #{tpu_custom_call.1} parent=15 // pred_check_branch
          %214 = sbr.rel (%p212) target = $region28
        $region27: #{tpu_custom_call.1} parent=15 // pred_region
          %p215 = scmp.lt.s32.totalorder %s26, 2
          %s216 = scalar_select %p215, %s26, 2
          %s217 = scalar_lea.vmem %s2, %s216
        $region28: #{tpu_custom_call.1} parent=15 // pred_fallthru
          _
      $region16: #{tpu_custom_call.1} parent=5 // pred_fallthru
        _
      %p218 = scmp.le.s32.totalorder 1, %s18
      %p219 = scmp.lt.s32.totalorder %s18, 28
      %p220 = pnand %p218, %p219
      %p221 = pneg %p220
      // Predicated region
      $region29: #{tpu_custom_call.1} parent=5 // pred_check
        _
      $region30: #{tpu_custom_call.1} parent=5 // pred_check_branch
        %223 = sbr.rel (%p220) target = $region32
      $region31: #{tpu_custom_call.1} parent=5 // pred_region
        %s224 = ssub.s32 %s18, 1
        %s225 = sand.u32 %s52, 1
        %s226 = scalar_lea.sflag [#allocation4], %s225
        %s227 = sand.u32 %s52, 1
        %s228 = smul.addr %s227, 32
        %s229 = scalar_lea.vmem [#allocation3], %s228
        // Predicated region
        $region33: #{tpu_custom_call.1} parent=31 // pred_check
          %p230 = pneg %p65
        $region34: #{tpu_custom_call.1} parent=31 // pred_check_branch
          %232 = sbr.rel (%p230) target = $region36
        $region35: #{tpu_custom_call.1} parent=31 // pred_region
          %233 = dma.done %s226, 512
        $region36: #{tpu_custom_call.1} parent=31 // pred_fallthru
          _
        %s234 = sand.u32 %s80, 1
        %s235 = scalar_lea.sflag [#allocation7], %s234
        %s236 = sand.u32 %s80, 1
        %s237 = smul.addr %s236, 128
        %s238 = scalar_lea.vmem [#allocation6], %s237
        // Predicated region
        $region37: #{tpu_custom_call.1} parent=31 // pred_check
          %p239 = pneg %p93
        $region38: #{tpu_custom_call.1} parent=31 // pred_check_branch
          %241 = sbr.rel (%p239) target = $region40
        $region39: #{tpu_custom_call.1} parent=31 // pred_region
          %242 = dma.done %s235, 2048
        $region40: #{tpu_custom_call.1} parent=31 // pred_fallthru
          _
        %s243 = sand.u32 %s52, 1
        %s244 = scalar_lea.sflag [#allocation4], %s243
        %s245 = sand.u32 %s52, 1
        %s246 = smul.addr %s245, 32
        %s247 = scalar_lea.vmem [#allocation3], %s246
        %p248 = pneg %p65
        %p249 = pneg %p62
        %s250 = sand.u32 %s80, 1
        %s251 = scalar_lea.sflag [#allocation7], %s250
        %s252 = sand.u32 %s80, 1
        %s253 = smul.addr %s252, 128
        %s254 = scalar_lea.vmem [#allocation6], %s253
        %p255 = pneg %p93
        %p256 = pneg %p90
        %p257 = scmp.lt.s32.totalorder %s29, 2
        %s258 = scalar_select %p257, %s29, 2
        %s259 = scalar_lea.vmem %s2, %s258
        %p260 = pneg %p119
        %p261 = pneg %p116
        %p262 = pneg %p147
        %p263 = pneg %p144
        %s264 = sand.u32 %s134, 1
        %s265 = scalar_lea.sflag [#allocation5], %s264
        %s266 = sand.u32 %s134, 1
        %s267 = smul.addr %s266, 32
        %s268 = scalar_lea.vmem [#allocation8], %s267
        %s269 = smul.u32 4, %s28
        %s270 = smul.u32 16, %s30
        %p271 = scmp.lt.s32.totalorder %s29, 2
        %s272 = scalar_select %p271, %s29, 2
        %s273 = scalar_lea.vmem %s2, %s272
        %s274 = smul.u32 4, %s28
        %p276 = scmp.eq.s32.totalorder %s30, 0
        // Predicated region
        $region41: #{tpu_custom_call.1} parent=31 // pred_check
          %p277 = pneg %p276
        $region42: #{tpu_custom_call.1} parent=31 // pred_check_branch
          %279 = sbr.rel (%p277) target = $region44
        $region43: #{tpu_custom_call.1} parent=31 // pred_region
          %280 = vst [vmem:[#allocation2] sm:$0xff] 0.0
          %281 = vst [vmem:[#allocation2 + $0x8] sm:$0xff] 0.0
          %282 = vst [vmem:[#allocation2 + $0x10] sm:$0xff] 0.0
          %283 = vst [vmem:[#allocation2 + $0x18] sm:$0xff] 0.0
        $region44: #{tpu_custom_call.1} parent=31 // pred_fallthru
          _
        %v284 = vld [vmem:[%s229] sm:$0xff]
        %v285 = vld [vmem:[%s229 + $0x8] sm:$0xff]
        %v286 = vld [vmem:[%s229 + $0x10] sm:$0xff]
        %v287 = vld [vmem:[%s229 + $0x18] sm:$0xff]
        %v288 = vpack.c.bf16 %v285, %v284
        %v289 = vpack.c.bf16 %v287, %v286
        %v290 = vld [vmem:[%s238] sm:$0xff]
        %v291 = vld [vmem:[%s238 + $0x8] sm:$0xff]
        %v292 = vld [vmem:[%s238 + $0x10] sm:$0xff]
        %v293 = vld [vmem:[%s238 + $0x18] sm:$0xff]
        %v294 = vld [vmem:[%s238 + $0x20] sm:$0xff]
        %v295 = vld [vmem:[%s238 + $0x28] sm:$0xff]
        %v296 = vld [vmem:[%s238 + $0x30] sm:$0xff]
        %v297 = vld [vmem:[%s238 + $0x38] sm:$0xff]
        %v298 = vld [vmem:[%s238 + $0x40] sm:$0xff]
        %v299 = vld [vmem:[%s238 + $0x48] sm:$0xff]
        %v300 = vld [vmem:[%s238 + $0x50] sm:$0xff]
        %v301 = vld [vmem:[%s238 + $0x58] sm:$0xff]
        %v302 = vld [vmem:[%s238 + $0x60] sm:$0xff]
        %v303 = vld [vmem:[%s238 + $0x68] sm:$0xff]
        %v304 = vld [vmem:[%s238 + $0x70] sm:$0xff]
        %v305 = vld [vmem:[%s238 + $0x78] sm:$0xff]
        %v306 = vpack.c.bf16 %v291, %v290
        %v307 = vpack.c.bf16 %v293, %v292
        %v308 = vpack.c.bf16 %v295, %v294
        %v309 = vpack.c.bf16 %v297, %v296
        %v310 = vpack.c.bf16 %v299, %v298
        %v311 = vpack.c.bf16 %v301, %v300
        %v312 = vpack.c.bf16 %v303, %v302
        %v313 = vpack.c.bf16 %v305, %v304
        %v314 = vld [vmem:[#allocation2] sm:$0xff]
        %v315 = vld [vmem:[#allocation2 + $0x8] sm:$0xff]
        %v316 = vld [vmem:[#allocation2 + $0x10] sm:$0xff]
        %v317 = vld [vmem:[#allocation2 + $0x18] sm:$0xff]
        %318 = vmatprep.subr.bf16.mxu0 0
        %319 = vmatpush1.bf16.msra.mxu0 %v313
        %320 = vmatprep.subr.bf16.mxu0 0
        %321 = vmatpush1.bf16.msra.mxu0 %v312
        %322 = vmatprep.subr.bf16.mxu0 0
        %323 = vmatpush1.bf16.msra.mxu0 %v311
        %324 = vmatprep.subr.bf16.mxu0 0
        %325 = vmatpush1.bf16.msra.mxu0 %v310
        %326 = vmatprep.subr.bf16.mxu0 0
        %327 = vmatpush1.bf16.msra.mxu0 %v309
        %328 = vmatprep.subr.bf16.mxu0 0
        %329 = vmatpush1.bf16.msra.mxu0 %v308
        %330 = vmatprep.subr.bf16.mxu0 0
        %331 = vmatpush1.bf16.msra.mxu0 %v307
        %332 = vmatprep.subr.bf16.mxu0 0
        %333 = vmatpush1.bf16.msra.mxu0 %v306
        %334 = vmatprep.subr.bf16.mxu0 0
        %335 = vmatpush2.bf16.msra.mxu0 0
        %336 = vmatprep.subr.bf16.mxu0 0
        %337 = vmatpush2.bf16.msra.mxu0 0
        %338 = vmatprep.subr.bf16.mxu0 0
        %339 = vmatpush2.bf16.msra.mxu0 0
        %340 = vmatprep.subr.bf16.mxu0 0
        %341 = vmatpush2.bf16.msra.mxu0 0
        %342 = vmatprep.subr.bf16.mxu0 0
        %343 = vmatpush2.bf16.msra.mxu0 0
        %344 = vmatprep.subr.bf16.mxu0 0
        %345 = vmatpush2.bf16.msra.mxu0 0
        %346 = vmatprep.subr.bf16.mxu0 0
        %347 = vmatpush2.bf16.msra.mxu0 0
        %348 = vmatprep.subr.bf16.mxu0 0
        %349 = vmatpush2.bf16.msra.mxu0 0
        %350 = vmatprep.mubr.bf16.mxu0 0
        %351 = vmatmul.mubr.bf16.gmra.mxu0 %v288
        %v352 = vpop.f32.mrf.mxu0
        %v353 = vadd.f32 0.0, %v352
        %v354 = vpop.f32.mrf.mxu0
        %v355 = vpop.f32.mrf.mxu0
        %v356 = vadd.f32 0.0, %v355
        %v357 = vpop.f32.mrf.mxu0
        %358 = vmatprep.mubr.bf16.mxu0 0
        %359 = vmatmul.mubr.bf16.gmra.mxu0 %v289
        %v360 = vpop.f32.mrf.mxu0
        %v361 = vadd.f32 0.0, %v360
        %v362 = vpop.f32.mrf.mxu0
        %v363 = vpop.f32.mrf.mxu0
        %v364 = vadd.f32 0.0, %v363
        %v365 = vpop.f32.mrf.mxu0
        %366 = vdwg.mxu0
        %v367 = vadd.f32 %v314, %v353
        %v368 = vadd.f32 %v315, %v356
        %v369 = vadd.f32 %v316, %v361
        %v370 = vadd.f32 %v317, %v364
        %371 = vst [vmem:[#allocation2] sm:$0xff] %v367
        %372 = vst [vmem:[#allocation2 + $0x8] sm:$0xff] %v368
        %373 = vst [vmem:[#allocation2 + $0x10] sm:$0xff] %v369
        %374 = vst [vmem:[#allocation2 + $0x18] sm:$0xff] %v370
        %p375 = scmp.eq.s32.totalorder %s30, 2
        // Predicated region
        $region45: #{tpu_custom_call.1} parent=31 // pred_check
          %p376 = pneg %p375
        $region46: #{tpu_custom_call.1} parent=31 // pred_check_branch
          %378 = sbr.rel (%p376) target = $region48
        $region47: #{tpu_custom_call.1} parent=31 // pred_region
          %v379 = vld [vmem:[#allocation2] sm:$0xff]
          %v380 = vld [vmem:[#allocation2 + $0x8] sm:$0xff]
          %v381 = vld [vmem:[#allocation2 + $0x10] sm:$0xff]
          %v382 = vld [vmem:[#allocation2 + $0x18] sm:$0xff]
          %v383 = vld [vmem:[%s273] sm:$0x1]
          %v385 = vlaneseq
          %v386 = vshrl.u32 %v385, 7
          %v387 = vsub.s32 0, %v386
          %v388 = vrot.slane %v383, %v387
          %v390 = vadd.f32 %v379, %v388
          %v391 = vadd.f32 %v380, %v388
          %v392 = vadd.f32 %v381, %v388
          %v393 = vadd.f32 %v382, %v388
          %394 = vst [vmem:[%s268] sm:$0xff] %v390
          %395 = vst [vmem:[%s268 + $0x8] sm:$0xff] %v391
          %396 = vst [vmem:[%s268 + $0x10] sm:$0xff] %v392
          %397 = vst [vmem:[%s268 + $0x18] sm:$0xff] %v393
        $region48: #{tpu_custom_call.1} parent=31 // pred_fallthru
          _
        %s398 = sand.u32 %s134, 1
        %s399 = scalar_lea.sflag [#allocation5], %s398
        %s400 = sand.u32 %s134, 1
        %s401 = smul.addr %s400, 32
        %s402 = scalar_lea.vmem [#allocation8], %s401
        // Predicated region
        $region49: #{tpu_custom_call.1} parent=31 // pred_check
          %p403 = pneg %p144
        $region50: #{tpu_custom_call.1} parent=31 // pred_check_branch
          %405 = sbr.rel (%p403) target = $region52
        $region51: #{tpu_custom_call.1} parent=31 // pred_region
          %s406 = smul.u32 4, %s28
          %s408 = ssub.s32 512, 512
          %409 = vsyncadd %s399, %s408
          %s410 = smul.addr %s406, 3
          %s411 = sadd.s32 %s29, %s410
          %s412 = smul.addr %s411, 128
          %s413 = scalar_lea.hbm %s3, %s412
          %s414 = sshll.u32 %s402, 4
          %s415 = int_to_ptr.vmem [resolvable:$true] %s414
          %420 = dma.vmem_to_hbm [thread:$0]  %s415, 512, %s413, %s399, 128, 384, 8
        $region52: #{tpu_custom_call.1} parent=31 // pred_fallthru
          _
      $region32: #{tpu_custom_call.1} parent=5 // pred_fallthru
        _
      %p421 = scmp.le.s32.totalorder 2, %s18
      // Predicated region
      $region53: #{tpu_custom_call.1} parent=5 // pred_check
        %p422 = pneg %p421
      $region54: #{tpu_custom_call.1} parent=5 // pred_check_branch
        %424 = sbr.rel (%p422) target = $region56
      $region55: #{tpu_custom_call.1} parent=5 // pred_region
        %s425 = ssub.s32 %s18, 2
        // Predicated region
        $region57: #{tpu_custom_call.1} parent=55 // pred_check
          %p426 = pneg %p150
        $region58: #{tpu_custom_call.1} parent=55 // pred_check_branch
          %428 = sbr.rel (%p426) target = $region60
        $region59: #{tpu_custom_call.1} parent=55 // pred_region
          %s429 = sand.u32 %s135, 1
          %s430 = scalar_lea.sflag [#allocation5], %s429
          %s431 = sand.u32 %s135, 1
          %s432 = smul.addr %s431, 32
          %s433 = scalar_lea.vmem [#allocation8], %s432
          %434 = dma.done %s430, 512
        $region60: #{tpu_custom_call.1} parent=55 // pred_fallthru
          _
      $region56: #{tpu_custom_call.1} parent=5 // pred_fallthru
        _
    $region6: #{tpu_custom_call.1} parent=1 // loop_footer
      %s22 = sadd.s32 1, %s18
    $region7: #{tpu_custom_call.1} parent=1 // loop_footer_branch
      %17 = sbr.rel target = $region3
    $region8: #{tpu_custom_call.1} parent=1 // loop_exit
      _
    %435 = vsyncpa [#allocation4], 1
    %s436 = scalar_lea.sflag [#allocation4], 1
    %437 = vsyncpa %s436, 1
    %438 = vsyncpa [#allocation7], 1
    %s439 = scalar_lea.sflag [#allocation7], 1
    %440 = vsyncpa %s439, 1
    %441 = vsyncpa [#allocation5], 1
    %s442 = scalar_lea.sflag [#allocation5], 1
    %443 = vsyncpa %s442, 1

</llo_original>
